<compile_context>
chip_gen: v6e
topology: v6e:2x2x1
jax: 0.10.0
libtpu: 0.0.40
codegen_flags: <defaults>
</compile_context>

<pallas_src>
import functools

import jax
import jax.numpy as jnp
from jax.experimental import pallas as pl
from jax.experimental.pallas import tpu as pltpu

EPS = 1e-5


def _round_up(x, m):
    return ((x + m - 1) // m) * m


def _pick_tn(np_):
    # Keep >=2 N blocks whenever possible so the "parallel" j axis can be
    # sharded across v7x's two TensorCores.  All channel counts in this model
    # are multiples of 128, so Np//2 stays 128-aligned.
    return np_ // 2 if np_ >= 256 else np_


# ----------------------------- Pallas kernels --------------------------------

def _mm_bn_kernel(a_ref, b_ref, g_ref, bt_ref, *rest,
                  valid_rows, relu, add_shortcut):
    """Fused: y = A @ B (bf16 MXU, f32 acc), training-mode BN stats + apply,
    optional residual/shortcut add, optional ReLU, padded-row zero mask,
    bf16 store.  Stats are exact because padded rows of A are zero."""
    if add_shortcut:
        sc_ref, o_ref = rest
    else:
        (o_ref,) = rest

    y = jnp.dot(a_ref[...], b_ref[...], preferred_element_type=jnp.float32)

    inv_cnt = 1.0 / float(valid_rows)
    s = jnp.sum(y, axis=0, keepdims=True)            # padded rows contribute 0
    sq = jnp.sum(y * y, axis=0, keepdims=True)
    mean = s * inv_cnt
    var = jnp.maximum(sq * inv_cnt - mean * mean, 0.0)   # biased var (train BN)
    scale = g_ref[...] * jax.lax.rsqrt(var + EPS)
    shift = bt_ref[...] - mean * scale

    z = y * scale + shift
    if add_shortcut:
        z = z + sc_ref[...].astype(jnp.float32)
    if relu:
        z = jnp.maximum(z, 0.0)
    if valid_rows < a_ref.shape[0]:
        # Zero padded rows so downstream fused stats / residual adds stay exact.
        rows = jax.lax.broadcasted_iota(jnp.int32, z.shape, 0)
        z = jnp.where(rows < valid_rows, z, 0.0)
    o_ref[...] = z.astype(o_ref.dtype)


def _mm_bias_relu_kernel(a_ref, b_ref, bias_ref, o_ref, *, valid_rows):
    """FC: y = A @ B + bias, ReLU, padded-row zero mask."""
    y = jnp.dot(a_ref[...], b_ref[...], preferred_element_type=jnp.float32)
    y = jnp.maximum(y + bias_ref[...], 0.0)
    if valid_rows < a_ref.shape[0]:
        rows = jax.lax.broadcasted_iota(jnp.int32, y.shape, 0)
        y = jnp.where(rows < valid_rows, y, 0.0)
    o_ref[...] = y


# ----------------------------- matmul wrappers --------------------------------

def matmul_bn(a, w, gamma, beta, *, valid_rows, relu, shortcut=None):
    """(Mp,Kp)bf16 @ (Kp,Np)bf16 with fused train-BN (+shortcut add)(+ReLU)
    -> (Mp,Np) bf16, rows >= valid_rows zeroed."""
    mp, kp = a.shape
    np_ = w.shape[1]
    tn = _pick_tn(np_)
    in_specs = [pl.BlockSpec((mp, kp), lambda j: (0, 0)),    # A fully resident
                pl.BlockSpec((kp, tn), lambda j: (0, j)),    # whole-K weight slab
                pl.BlockSpec((1, tn), lambda j: (0, j)),
                pl.BlockSpec((1, tn), lambda j: (0, j))]
    args = [a, w, gamma, beta]
    if shortcut is not None:
        in_specs.append(pl.BlockSpec((mp, tn), lambda j: (0, j)))
        args.append(shortcut)
    return pl.pallas_call(
        functools.partial(_mm_bn_kernel, valid_rows=valid_rows, relu=relu,
                          add_shortcut=shortcut is not None),
        out_shape=jax.ShapeDtypeStruct((mp, np_), jnp.bfloat16),
        grid_spec=pltpu.PrefetchScalarGridSpec(
            num_scalar_prefetch=0,
            grid=(np_ // tn,),
            in_specs=in_specs,
            out_specs=pl.BlockSpec((mp, tn), lambda j: (0, j)),
        ),
        compiler_params=pltpu.CompilerParams(dimension_semantics=("parallel",)),
    )(*args)


def matmul_bias_relu(a, w, bias, *, valid_rows):
    """(Mp,Kp)bf16 @ (Kp,Np)bf16 + bias, ReLU -> (Mp,Np) f32.  Used for the FC."""
    mp, kp = a.shape
    np_ = w.shape[1]
    tn = _pick_tn(np_)
    return pl.pallas_call(
        functools.partial(_mm_bias_relu_kernel, valid_rows=valid_rows),
        out_shape=jax.ShapeDtypeStruct((mp, np_), jnp.float32),
        grid_spec=pltpu.PrefetchScalarGridSpec(
            num_scalar_prefetch=0,
            grid=(np_ // tn,),
            in_specs=[pl.BlockSpec((mp, kp), lambda j: (0, 0)),
                      pl.BlockSpec((kp, tn), lambda j: (0, j)),
                      pl.BlockSpec((1, tn), lambda j: (0, j))],
            out_specs=pl.BlockSpec((mp, tn), lambda j: (0, j)),
        ),
        compiler_params=pltpu.CompilerParams(dimension_semantics=("parallel",)),
    )(a, w, bias)


# ------------------------------ XLA glue helpers -------------------------------

def _im2col(x, kh, kw, stride, pad):
    # TODO(synk): im2col window extraction stays as XLA strided-slice/concat glue;
    # the cols tensors are tiny versus the bf16 weight stream at this size.
    n, h, w, c = x.shape
    if pad:
        x = jnp.pad(x, ((0, 0), (pad, pad), (pad, pad), (0, 0)))
    hp, wp = x.shape[1], x.shape[2]
    ho = (hp - kh) // stride + 1
    wo = (wp - kw) // stride + 1
    slices = [x[:, dy:dy + stride * ho:stride, dx:dx + stride * wo:stride, :]
              for dy in range(kh) for dx in range(kw)]
    cols = jnp.concatenate(slices, axis=-1) if len(slices) > 1 else slices[0]
    return cols.reshape(n * ho * wo, kh * kw * c), ho, wo


def maxpool_3x3_s2(x):
    # TODO(synk): stem-only window max kept in plain JAX (one tiny fused XLA op).
    n, h, w, c = x.shape
    ho = (h - 3) // 2 + 1
    wo = (w - 3) // 2 + 1
    out = None
    for dy in range(3):
        for dx in range(3):
            sl = x[:, dy:dy + 2 * ho:2, dx:dx + 2 * wo:2, :]
            out = sl if out is None else jnp.maximum(out, sl)
    return out


def _pad_rows(x2d, mp):
    m = x2d.shape[0]
    return x2d if m == mp else jnp.pad(x2d, ((0, mp - m), (0, 0)))


# ------------------------------ forward stages --------------------------------

@jax.jit
def stem_fwd(x_nchw, w1, g1, b1):
    x = jnp.transpose(x_nchw, (0, 2, 3, 1)).astype(jnp.bfloat16)   # NCHW -> NHWC
    n = x.shape[0]
    cols, ho, wo = _im2col(x, 7, 7, 2, 3)
    m = n * ho * wo
    mp = _round_up(max(m, 8), 16)
    cols = jnp.pad(cols, ((0, mp - m), (0, w1.shape[0] - cols.shape[1])))
    z = matmul_bn(cols, w1, g1, b1, valid_rows=m, relu=False)      # conv1 + bn1
    z4 = z[:m].reshape(n, ho, wo, z.shape[1])                      # padded ch stay 0
    pooled = maxpool_3x3_s2(z4)
    mo = n * pooled.shape[1] * pooled.shape[2]
    return _pad_rows(pooled.reshape(mo, pooled.shape[3]),
                     _round_up(max(mo, 8), 16))


@functools.partial(jax.jit, static_argnames=("n", "h", "w", "m", "stride"))
def bottleneck_fwd(x_pad, p, *, n, h, w, m, stride):
    """x_pad: row/channel padded bf16 (Mp_in, Cin_p); padded rows are zero."""
    ic_p = x_pad.shape[1]
    if stride == 2:
        x4 = x_pad[:m].reshape(n, h, w, ic_p)[:, ::2, ::2, :]      # 1x1/s2 sampling
        ho, wo = x4.shape[1], x4.shape[2]
        mo = n * ho * wo
        mp = _round_up(max(mo, 8), 16)
        x1 = _pad_rows(x4.reshape(mo, ic_p), mp)
    else:
        ho, wo, mo = h, w, m
        mp = x_pad.shape[0]
        x1 = x_pad

    # conv1 (1x1, stride) + bn1            [no ReLU in this model]
    z1 = matmul_bn(x1, p["w1"], p["g1"], p["b1"], valid_rows=mo, relu=False)

    # conv2 (3x3, pad 1) + bn2             [no ReLU in this model]
    cols, _, _ = _im2col(z1[:mo].reshape(n, ho, wo, z1.shape[1]), 3, 3, 1, 1)
    z2 = matmul_bn(_pad_rows(cols, mp), p["w2"], p["g2"], p["b2"],
                   valid_rows=mo, relu=False)

    # shortcut: identity, or conv(1x1,s2) + BN + ReLU fused into one matmul
    if stride == 2:
        sc = matmul_bn(x1, p["ws"], p["gs"], p["bs"], valid_rows=mo, relu=True)
    else:
        sc = x_pad

    # conv3 (1x1) + bn3 + residual add + ReLU, all in the matmul epilogue
    return matmul_bn(z2, p["w3"], p["g3"], p["b3"], valid_rows=mo, relu=True,
                     shortcut=sc)


@functools.partial(jax.jit, static_argnames=("n", "hw", "m", "nc"))
def head_fwd(x_pad, fc_w, fc_b, *, n, hw, m, nc):
    c = x_pad.shape[1]
    # AdaptiveAvgPool2d((1,1)) + flatten
    pooled = jnp.mean(x_pad[:m].reshape(n, hw, c).astype(jnp.float32), axis=1)
    a = _pad_rows(pooled.astype(jnp.bfloat16), _round_up(max(n, 8), 16))
    out = matmul_bias_relu(a, fc_w, fc_b, valid_rows=n)   # Linear + fused ReLU
    return out[:n, :nc]


def myresnet101_forward(params, x_nchw):
    n, _, hi, wi = x_nchw.shape
    h = (hi + 2 * 3 - 7) // 2 + 1                # conv1 7x7 s2 p3
    w = (wi + 2 * 3 - 7) // 2 + 1
    h = (h - 3) // 2 + 1                         # maxpool 3x3 s2
    w = (w - 3) // 2 + 1
    x = stem_fwd(x_nchw, params["conv1"], params["bn1_g"], params["bn1_b"])
    m = n * h * w
    for name in ("layer1", "layer2", "layer3", "layer4"):
        for blk in params[name]:
            stride = blk["stride"]
            x = bottleneck_fwd(x, blk["p"], n=n, h=h, w=w, m=m, stride=stride)
            if stride == 2:
                h = (h - 1) // 2 + 1
                w = (w - 1) // 2 + 1
                m = n * h * w
    return head_fwd(x, params["fc_w"], params["fc_b"],
                    n=n, hw=h * w, m=m, nc=params["num_classes"])


# ------------------------------ parameters ------------------------------------

def _conv_w(key, kh, kw, cin, cout, cin_p=None, cout_p=None):
    """Conv weight stored pre-reshaped to (kh*kw*cin_p, cout_p) bf16, with padded
    input/output channels zeroed.  Conv bias omitted: exactly cancelled by the
    following training-mode BN."""
    cin_p = cin if cin_p is None else cin_p
    cout_p = cout if cout_p is None else cout_p
    fan_in = kh * kw * cin
    w = jax.random.normal(key, (kh, kw, cin, cout), jnp.float32) * jnp.sqrt(2.0 / fan_in)
    w = jnp.pad(w, ((0, 0), (0, 0), (0, cin_p - cin), (0, cout_p - cout)))
    return w.reshape(kh * kw * cin_p, cout_p).astype(jnp.bfloat16)


def _bn_p(c, c_p):
    gamma = jnp.pad(jnp.ones((1, c), jnp.float32), ((0, 0), (0, c_p - c)))
    beta = jnp.zeros((1, c_p), jnp.float32)
    return gamma, beta        # zero-padded gamma keeps padded channels at exactly 0


def make_bottleneck_params(key, ic, mc, oc):
    stride = 1 if ic == oc else 2
    ic_p, mc_p, oc_p = (_round_up(c, 128) for c in (ic, mc, oc))
    ks = jax.random.split(key, 4)
    p = {"w1": _conv_w(ks[0], 1, 1, ic, mc, ic_p, mc_p),
         "w2": _conv_w(ks[1], 3, 3, mc, mc, mc_p, mc_p),
         "w3": _conv_w(ks[2], 1, 1, mc, oc, mc_p, oc_p)}
    p["g1"], p["b1"] = _bn_p(mc, mc_p)
    p["g2"], p["b2"] = _bn_p(mc, mc_p)
    p["g3"], p["b3"] = _bn_p(oc, oc_p)
    if stride == 2:
        p["ws"] = _conv_w(ks[3], 1, 1, ic, oc, ic_p, oc_p)
        p["gs"], p["bs"] = _bn_p(oc, oc_p)
    return {"stride": stride, "p": p}


def make_params(key, num_classes=6):
    params = {"num_classes": num_classes}
    key, k = jax.random.split(key)
    w1 = _conv_w(k, 7, 7, 3, 64, cout_p=128)                      # (147, 128)
    params["conv1"] = jnp.pad(w1, ((0, 256 - 147), (0, 0)))       # pre-pad K to 256
    params["bn1_g"], params["bn1_b"] = _bn_p(64, 128)
    layer_cfgs = [
        ("layer1", [(64, 64, 256), (256, 64, 256), (256, 64, 256)]),
        ("layer2", [(256, 128, 512)] + [(512, 128, 512)] * 3),
        ("layer3", [(512, 256, 1024)] + [(1024, 256, 1024)] * 22),
        ("layer4", [(1024, 512, 2048)] + [(2048, 512, 2048)] * 2),
    ]
    for name, cfg in layer_cfgs:
        blocks = []
        for (ic, mc, oc) in cfg:
            key, k = jax.random.split(key)
            blocks.append(make_bottleneck_params(k, ic, mc, oc))
        params[name] = blocks
    nc_p = _round_up(num_classes, 128)
    key, kw_, kb = jax.random.split(key, 3)
    fc_w = jax.random.normal(kw_, (2048, num_classes), jnp.float32) / jnp.sqrt(2048.0)
    params["fc_w"] = jnp.pad(fc_w, ((0, 0), (0, nc_p - num_classes))).astype(jnp.bfloat16)
    params["fc_b"] = jnp.zeros((1, nc_p), jnp.float32)
    return params


# ------------------------------ entry point ------------------------------------

if __name__ == "__main__":
    key = jax.random.PRNGKey(0)
    pkey, xkey = jax.random.split(key)
    params = make_params(pkey, num_classes=6)
    x = jax.random.normal(xkey, (2, 3, 16, 16), jnp.float32)   # NCHW like PyTorch
    out = myresnet101_forward(params, x)
    out = jax.block_until_ready(out)
    assert out.shape == (2, 6) and bool(jnp.all(jnp.isfinite(out)))
    print("KERNEL_OK")
</pallas_src>

<mosaic_0001>
module attributes {stable_mosaic.version = 11 : i64} {
  func.func @_mm_bn_kernel(%arg0: i32, %arg1: memref<128x256xbf16, #tpu.memory_space<vmem>>, %arg2: memref<256x128xbf16, #tpu.memory_space<vmem>>, %arg3: memref<1x128xf32, #tpu.memory_space<vmem>>, %arg4: memref<1x128xf32, #tpu.memory_space<vmem>>, %arg5: memref<128x128xbf16, #tpu.memory_space<vmem>>) attributes {dimension_semantics = [#tpu.dimension_semantics<parallel>], iteration_bounds = array<i64: 1>, scalar_prefetch = 0 : i64, scratch_operands = 0 : i64, tpu.core_type = #tpu.core_type<tc>, window_params = [{pipeline_mode = #tpu.pipeline_mode<synchronous>, transform_indices = @transform_0, window_bounds = array<i64: 128, 256>}, {transform_indices = @transform_1, window_bounds = array<i64: 256, 128>}, {transform_indices = @transform_2, window_bounds = array<i64: 1, 128>}, {transform_indices = @transform_3, window_bounds = array<i64: 1, 128>}, {transform_indices = @transform_4, window_bounds = array<i64: 128, 128>}]} {
    %c0 = arith.constant 0 : index
    %c0_0 = arith.constant 0 : index
    %0 = vector.load %arg1[%c0, %c0_0] : memref<128x256xbf16, #tpu.memory_space<vmem>>, vector<128x256xbf16>
    %c0_1 = arith.constant 0 : index
    %c0_2 = arith.constant 0 : index
    %1 = vector.load %arg2[%c0_1, %c0_2] : memref<256x128xbf16, #tpu.memory_space<vmem>>, vector<256x128xbf16>
    %cst = arith.constant dense<0.000000e+00> : vector<128x128xf32>
    %2 = tpu.matmul %0, %1, %cst {dimension_numbers = #tpu.dot_dimension_numbers<[1], [0], [0], [1], [0, 0, 1, 1], [], []>} : vector<128x256xbf16>, vector<256x128xbf16>, vector<128x128xf32> -> vector<128x128xf32>
    %cst_3 = arith.constant dense<0.000000e+00> : vector<128xf32>
    %3 = vector.multi_reduction <add>, %2, %cst_3 [0] : vector<128x128xf32> to vector<128xf32>
    %4 = vector.shape_cast %3 : vector<128xf32> to vector<1x128xf32>
    %5 = arith.mulf %2, %2 : vector<128x128xf32>
    %cst_4 = arith.constant dense<0.000000e+00> : vector<128xf32>
    %6 = vector.multi_reduction <add>, %5, %cst_4 [0] : vector<128x128xf32> to vector<128xf32>
    %7 = vector.shape_cast %6 : vector<128xf32> to vector<1x128xf32>
    %cst_5 = arith.constant 7.812500e-03 : f32
    %8 = vector.broadcast %cst_5 : f32 to vector<1x128xf32>
    %9 = arith.mulf %4, %8 : vector<1x128xf32>
    %cst_6 = arith.constant 7.812500e-03 : f32
    %10 = vector.broadcast %cst_6 : f32 to vector<1x128xf32>
    %11 = arith.mulf %7, %10 : vector<1x128xf32>
    %12 = arith.mulf %9, %9 : vector<1x128xf32>
    %13 = arith.subf %11, %12 : vector<1x128xf32>
    %cst_7 = arith.constant 0.000000e+00 : f32
    %14 = vector.broadcast %cst_7 : f32 to vector<1x128xf32>
    %15 = arith.maximumf %13, %14 : vector<1x128xf32>
    %c0_8 = arith.constant 0 : index
    %c0_9 = arith.constant 0 : index
    %16 = vector.load %arg3[%c0_8, %c0_9] : memref<1x128xf32, #tpu.memory_space<vmem>>, vector<1x128xf32>
    %cst_10 = arith.constant 9.99999974E-6 : f32
    %17 = vector.broadcast %cst_10 : f32 to vector<1x128xf32>
    %18 = arith.addf %15, %17 : vector<1x128xf32>
    %19 = math.rsqrt %18 : vector<1x128xf32>
    %20 = arith.mulf %16, %19 : vector<1x128xf32>
    %c0_11 = arith.constant 0 : index
    %c0_12 = arith.constant 0 : index
    %21 = vector.load %arg4[%c0_11, %c0_12] : memref<1x128xf32, #tpu.memory_space<vmem>>, vector<1x128xf32>
    %22 = arith.mulf %9, %20 : vector<1x128xf32>
    %23 = arith.subf %21, %22 : vector<1x128xf32>
    %24 = vector.broadcast %20 : vector<1x128xf32> to vector<128x128xf32>
    %25 = arith.mulf %2, %24 : vector<128x128xf32>
    %26 = vector.broadcast %23 : vector<1x128xf32> to vector<128x128xf32>
    %27 = arith.addf %25, %26 : vector<128x128xf32>
    %28 = arith.truncf %27 : vector<128x128xf32> to vector<128x128xbf16>
    %c0_13 = arith.constant 0 : index
    %c0_14 = arith.constant 0 : index
    %29 = vector.load %arg5[%c0_13, %c0_14] : memref<128x128xbf16, #tpu.memory_space<vmem>>, vector<128x128xbf16>
    tpu.vector_store %arg5[%c0_13, %c0_14], %28 {strides = array<i32>} : memref<128x128xbf16, #tpu.memory_space<vmem>>, vector<128x128xbf16>,
    return
  }
  func.func @transform_0(%arg0: i32) -> (i32, i32) {
    %c0_i32 = arith.constant 0 : i32
    %c0_i32_0 = arith.constant 0 : i32
    %c0_i32_1 = arith.constant 0 : i32
    return %c0_i32, %c0_i32_0 : i32, i32
  }
  func.func @transform_1(%arg0: i32) -> (i32, i32) {
    %c0_i32 = arith.constant 0 : i32
    %c0_i32_0 = arith.constant 0 : i32
    return %c0_i32, %arg0 : i32, i32
  }
  func.func @transform_2(%arg0: i32) -> (i32, i32) {
    %c0_i32 = arith.constant 0 : i32
    %c0_i32_0 = arith.constant 0 : i32
    return %c0_i32, %arg0 : i32, i32
  }
  func.func @transform_3(%arg0: i32) -> (i32, i32) {
    %c0_i32 = arith.constant 0 : i32
    %c0_i32_0 = arith.constant 0 : i32
    return %c0_i32, %arg0 : i32, i32
  }
  func.func @transform_4(%arg0: i32) -> (i32, i32) {
    %c0_i32 = arith.constant 0 : i32
    %c0_i32_0 = arith.constant 0 : i32
    return %c0_i32, %arg0 : i32, i32
  }
}

</mosaic_0001>

<llo_original>
// kernel: stem_fwd.1
$region0: #{stem_fwd.1}
  #allocation0 [shape = 'u32[]', space=smem, size = 0x4, offset = 0x4, fixed_abs, tag = 'smem constant byte address 0x4 - core index']
  #allocation1 [shape = 'u32[144,128]{1,0:T(1,128)}', space=vmem, size = 0x12000, scoped, tag = 'internal scratch']
  %s0 = inlined_call_operand.vmem [shape: bf16[128,256], index: 0, kind: input, shape index: {}]
  %s1 = inlined_call_operand.vmem [shape: bf16[256,128], index: 1, kind: input, shape index: {}]
  %s2 = inlined_call_operand.vmem [shape: f32[1,128], index: 2, kind: input, shape index: {}]
  %s3 = inlined_call_operand.vmem [shape: f32[1,128], index: 3, kind: input, shape index: {}]
  %s4 = inlined_call_operand.vmem [shape: bf16[128,128], index: 4, kind: output, shape index: {}]
  %s5 = sld [smem:[#allocation0]]
  $region26: #{stem_fwd.1} parent=0
    _
  %s7 = ssub.s32 1, %s5
  %s8 = scalar_select 0, %s7, %s5
  // Predicated region
  $region2: #{stem_fwd.1} parent=0 // pred_check
    _
  $region3: #{stem_fwd.1} parent=0 // pred_check_branch
    %10 = sbr.rel (0) target = $region5
  $region4: #{stem_fwd.1} parent=0 // pred_region
    _
  $region5: #{stem_fwd.1} parent=0 // pred_fallthru
    _
  // Predicated region
  $region6: #{stem_fwd.1} parent=0 // pred_check
    _
  $region7: #{stem_fwd.1} parent=0 // pred_check_branch
    %12 = sbr.rel (0) target = $region9
  $region8: #{stem_fwd.1} parent=0 // pred_region
    _
  $region9: #{stem_fwd.1} parent=0 // pred_fallthru
    _
  // Predicated region
  $region10: #{stem_fwd.1} parent=0 // pred_check
    _
  $region11: #{stem_fwd.1} parent=0 // pred_check_branch
    %14 = sbr.rel (0) target = $region13
  $region12: #{stem_fwd.1} parent=0 // pred_region
    _
  $region13: #{stem_fwd.1} parent=0 // pred_fallthru
    _
  // Predicated region
  $region14: #{stem_fwd.1} parent=0 // pred_check
    _
  $region15: #{stem_fwd.1} parent=0 // pred_check_branch
    %16 = sbr.rel (0) target = $region17
  $region16: #{stem_fwd.1} parent=0 // pred_region
    _
  $region17: #{stem_fwd.1} parent=0 // pred_fallthru
    _
  %v18 = vld [vmem:[%s0] sm:$0xff]
  %v19 = vld [vmem:[%s0 + $0x8] sm:$0xff]
  %v20 = vld [vmem:[%s0 + $0x10] sm:$0xff]
  %v21 = vld [vmem:[%s0 + $0x18] sm:$0xff]
  %v22 = vld [vmem:[%s0 + $0x20] sm:$0xff]
  %v23 = vld [vmem:[%s0 + $0x28] sm:$0xff]
  %v24 = vld [vmem:[%s0 + $0x30] sm:$0xff]
  %v25 = vld [vmem:[%s0 + $0x38] sm:$0xff]
  %v26 = vld [vmem:[%s0 + $0x40] sm:$0xff]
  %v27 = vld [vmem:[%s0 + $0x48] sm:$0xff]
  %v28 = vld [vmem:[%s0 + $0x50] sm:$0xff]
  %v29 = vld [vmem:[%s0 + $0x58] sm:$0xff]
  %v30 = vld [vmem:[%s0 + $0x60] sm:$0xff]
  %v31 = vld [vmem:[%s0 + $0x68] sm:$0xff]
  %v32 = vld [vmem:[%s0 + $0x70] sm:$0xff]
  %v33 = vld [vmem:[%s0 + $0x78] sm:$0xff]
  %v34 = vld [vmem:[%s1] sm:$0xf]
  %v35 = vld [vmem:[%s1 + $0x4] sm:$0xf]
  %v36 = vld [vmem:[%s1 + $0x8] sm:$0xf]
  %v37 = vld [vmem:[%s1 + $0xc] sm:$0xf]
  %v38 = vld [vmem:[%s1 + $0x10] sm:$0xf]
  %v39 = vld [vmem:[%s1 + $0x14] sm:$0xf]
  %v40 = vld [vmem:[%s1 + $0x18] sm:$0xf]
  %v41 = vld [vmem:[%s1 + $0x1c] sm:$0xf]
  %v42 = vld [vmem:[%s1 + $0x20] sm:$0xf]
  %v43 = vld [vmem:[%s1 + $0x24] sm:$0xf]
  %v44 = vld [vmem:[%s1 + $0x28] sm:$0xf]
  %v45 = vld [vmem:[%s1 + $0x2c] sm:$0xf]
  %v46 = vld [vmem:[%s1 + $0x30] sm:$0xf]
  %v47 = vld [vmem:[%s1 + $0x34] sm:$0xf]
  %v48 = vld [vmem:[%s1 + $0x38] sm:$0xf]
  %v49 = vld [vmem:[%s1 + $0x3c] sm:$0xf]
  %v50 = vld [vmem:[%s1 + $0x40] sm:$0xf]
  %v51 = vld [vmem:[%s1 + $0x44] sm:$0xf]
  %v52 = vld [vmem:[%s1 + $0x48] sm:$0xf]
  %v53 = vld [vmem:[%s1 + $0x4c] sm:$0xf]
  %v54 = vld [vmem:[%s1 + $0x50] sm:$0xf]
  %v55 = vld [vmem:[%s1 + $0x54] sm:$0xf]
  %v56 = vld [vmem:[%s1 + $0x58] sm:$0xf]
  %v57 = vld [vmem:[%s1 + $0x5c] sm:$0xf]
  %v58 = vld [vmem:[%s1 + $0x60] sm:$0xf]
  %v59 = vld [vmem:[%s1 + $0x64] sm:$0xf]
  %v60 = vld [vmem:[%s1 + $0x68] sm:$0xf]
  %v61 = vld [vmem:[%s1 + $0x6c] sm:$0xf]
  %v62 = vld [vmem:[%s1 + $0x70] sm:$0xf]
  %v63 = vld [vmem:[%s1 + $0x74] sm:$0xf]
  %v64 = vld [vmem:[%s1 + $0x78] sm:$0xf]
  %v65 = vld [vmem:[%s1 + $0x7c] sm:$0xf]
  %v82 = vunpack.c.l.b16 %v18
  %v83 = vunpack.c.h.b16 %v18
  %v84 = vunpack.c.l.b16 %v19
  %v85 = vunpack.c.h.b16 %v19
  %v86 = vunpack.c.l.b16 %v20
  %v87 = vunpack.c.h.b16 %v20
  %v88 = vunpack.c.l.b16 %v21
  %v89 = vunpack.c.h.b16 %v21
  %v90 = vunpack.c.l.b16 %v22
  %v91 = vunpack.c.h.b16 %v22
  %v92 = vunpack.c.l.b16 %v23
  %v93 = vunpack.c.h.b16 %v23
  %v94 = vunpack.c.l.b16 %v24
  %v95 = vunpack.c.h.b16 %v24
  %v96 = vunpack.c.l.b16 %v25
  %v97 = vunpack.c.h.b16 %v25
  %v98 = vunpack.c.l.b16 %v26
  %v99 = vunpack.c.h.b16 %v26
  %v100 = vunpack.c.l.b16 %v27
  %v101 = vunpack.c.h.b16 %v27
  %v102 = vunpack.c.l.b16 %v28
  %v103 = vunpack.c.h.b16 %v28
  %v104 = vunpack.c.l.b16 %v29
  %v105 = vunpack.c.h.b16 %v29
  %v106 = vunpack.c.l.b16 %v30
  %v107 = vunpack.c.h.b16 %v30
  %v108 = vunpack.c.l.b16 %v31
  %v109 = vunpack.c.h.b16 %v31
  %v110 = vunpack.c.l.b16 %v32
  %v111 = vunpack.c.h.b16 %v32
  %v112 = vunpack.c.l.b16 %v33
  %v113 = vunpack.c.h.b16 %v33
  %v114 = vpack.c.b16 %v84, %v82
  %v115 = vpack.c.b16 %v85, %v83
  %v116 = vpack.c.b16 %v88, %v86
  %v117 = vpack.c.b16 %v89, %v87
  %v118 = vpack.c.b16 %v92, %v90
  %v119 = vpack.c.b16 %v93, %v91
  %v120 = vpack.c.b16 %v96, %v94
  %v121 = vpack.c.b16 %v97, %v95
  %v122 = vpack.c.b16 %v100, %v98
  %v123 = vpack.c.b16 %v101, %v99
  %v124 = vpack.c.b16 %v104, %v102
  %v125 = vpack.c.b16 %v105, %v103
  %v126 = vpack.c.b16 %v108, %v106
  %v127 = vpack.c.b16 %v109, %v107
  %v128 = vpack.c.b16 %v112, %v110
  %v129 = vpack.c.b16 %v113, %v111
  %v178 = vunpack.c.l.b16 %v34
  %v179 = vunpack.c.l.b16 %v35
  %v180 = vunpack.c.l.b16 %v36
  %v181 = vunpack.c.l.b16 %v37
  %v182 = vunpack.c.l.b16 %v38
  %v183 = vunpack.c.l.b16 %v39
  %v184 = vunpack.c.l.b16 %v40
  %v185 = vunpack.c.l.b16 %v41
  %v186 = vunpack.c.l.b16 %v42
  %v187 = vunpack.c.l.b16 %v43
  %v188 = vunpack.c.l.b16 %v44
  %v189 = vunpack.c.l.b16 %v45
  %v190 = vunpack.c.l.b16 %v46
  %v191 = vunpack.c.l.b16 %v47
  %v192 = vunpack.c.l.b16 %v48
  %v193 = vunpack.c.l.b16 %v49
  %v194 = vunpack.c.l.b16 %v50
  %v195 = vunpack.c.l.b16 %v51
  %v196 = vunpack.c.l.b16 %v52
  %v197 = vunpack.c.l.b16 %v53
  %v198 = vunpack.c.l.b16 %v54
  %v199 = vunpack.c.l.b16 %v55
  %v200 = vunpack.c.l.b16 %v56
  %v201 = vunpack.c.l.b16 %v57
  %v202 = vunpack.c.l.b16 %v58
  %v203 = vunpack.c.l.b16 %v59
  %v204 = vunpack.c.l.b16 %v60
  %v205 = vunpack.c.l.b16 %v61
  %v206 = vunpack.c.l.b16 %v62
  %v207 = vunpack.c.l.b16 %v63
  %v208 = vunpack.c.l.b16 %v64
  %v209 = vunpack.c.l.b16 %v65
  %v210 = vpack.c.b16 %v179, %v178
  %v211 = vpack.c.b16 %v181, %v180
  %v212 = vpack.c.b16 %v183, %v182
  %v213 = vpack.c.b16 %v185, %v184
  %v214 = vpack.c.b16 %v187, %v186
  %v215 = vpack.c.b16 %v189, %v188
  %v216 = vpack.c.b16 %v191, %v190
  %v217 = vpack.c.b16 %v193, %v192
  %v218 = vpack.c.b16 %v195, %v194
  %v219 = vpack.c.b16 %v197, %v196
  %v220 = vpack.c.b16 %v199, %v198
  %v221 = vpack.c.b16 %v201, %v200
  %v222 = vpack.c.b16 %v203, %v202
  %v223 = vpack.c.b16 %v205, %v204
  %v224 = vpack.c.b16 %v207, %v206
  %v225 = vpack.c.b16 %v209, %v208
  %242 = vmatprep.subr.bf16.mxu0 0
  %243 = vmatpush1.bf16.msra.mxu0 %v217
  %244 = vmatprep.subr.bf16.mxu0 0
  %245 = vmatpush1.bf16.msra.mxu0 %v216
  %246 = vmatprep.subr.bf16.mxu0 0
  %247 = vmatpush1.bf16.msra.mxu0 %v215
  %248 = vmatprep.subr.bf16.mxu0 0
  %249 = vmatpush1.bf16.msra.mxu0 %v214
  %250 = vmatprep.subr.bf16.mxu0 0
  %251 = vmatpush1.bf16.msra.mxu0 %v213
  %252 = vmatprep.subr.bf16.mxu0 0
  %253 = vmatpush1.bf16.msra.mxu0 %v212
  %254 = vmatprep.subr.bf16.mxu0 0
  %255 = vmatpush1.bf16.msra.mxu0 %v211
  %256 = vmatprep.subr.bf16.mxu0 0
  %257 = vmatpush1.bf16.msra.mxu0 %v210
  %258 = vmatprep.subr.bf16.mxu0 0
  %259 = vmatpush2.bf16.msra.mxu0 %v225
  %260 = vmatprep.subr.bf16.mxu0 0
  %261 = vmatpush2.bf16.msra.mxu0 %v224
  %262 = vmatprep.subr.bf16.mxu0 0
  %263 = vmatpush2.bf16.msra.mxu0 %v223
  %264 = vmatprep.subr.bf16.mxu0 0
  %265 = vmatpush2.bf16.msra.mxu0 %v222
  %266 = vmatprep.subr.bf16.mxu0 0
  %267 = vmatpush2.bf16.msra.mxu0 %v221
  %268 = vmatprep.subr.bf16.mxu0 0
  %269 = vmatpush2.bf16.msra.mxu0 %v220
  %270 = vmatprep.subr.bf16.mxu0 0
  %271 = vmatpush2.bf16.msra.mxu0 %v219
  %272 = vmatprep.subr.bf16.mxu0 0
  %273 = vmatpush2.bf16.msra.mxu0 %v218
  %274 = vmatprep.mubr.bf16.mxu0 %v115
  %275 = vmatmul.mubr.bf16.gmra.mxu0 %v114
  %v276 = vpop.f32.mrf.mxu0
  %v277 = vadd.f32 0.0, %v276
  %v278 = vpop.f32.mrf.mxu0
  %v279 = vpop.f32.mrf.mxu0
  %v280 = vadd.f32 0.0, %v279
  %v281 = vpop.f32.mrf.mxu0
  %282 = vmatprep.mubr.bf16.mxu0 %v117
  %283 = vmatmul.mubr.bf16.gmra.mxu0 %v116
  %v284 = vpop.f32.mrf.mxu0
  %v285 = vadd.f32 0.0, %v284
  %v286 = vpop.f32.mrf.mxu0
  %v287 = vpop.f32.mrf.mxu0
  %v288 = vadd.f32 0.0, %v287
  %v289 = vpop.f32.mrf.mxu0
  %290 = vmatprep.mubr.bf16.mxu0 %v119
  %291 = vmatmul.mubr.bf16.gmra.mxu0 %v118
  %v292 = vpop.f32.mrf.mxu0
  %v293 = vadd.f32 0.0, %v292
  %v294 = vpop.f32.mrf.mxu0
  %v295 = vpop.f32.mrf.mxu0
  %v296 = vadd.f32 0.0, %v295
  %v297 = vpop.f32.mrf.mxu0
  %298 = vmatprep.mubr.bf16.mxu0 %v121
  %299 = vmatmul.mubr.bf16.gmra.mxu0 %v120
  %v300 = vpop.f32.mrf.mxu0
  %v301 = vadd.f32 0.0, %v300
  %v302 = vpop.f32.mrf.mxu0
  %v303 = vpop.f32.mrf.mxu0
  %v304 = vadd.f32 0.0, %v303
  %v305 = vpop.f32.mrf.mxu0
  %306 = vmatprep.mubr.bf16.mxu0 %v123
  %307 = vmatmul.mubr.bf16.gmra.mxu0 %v122
  %v308 = vpop.f32.mrf.mxu0
  %v309 = vadd.f32 0.0, %v308
  %v310 = vpop.f32.mrf.mxu0
  %v311 = vpop.f32.mrf.mxu0
  %v312 = vadd.f32 0.0, %v311
  %v313 = vpop.f32.mrf.mxu0
  %314 = vmatprep.mubr.bf16.mxu0 %v125
  %315 = vmatmul.mubr.bf16.gmra.mxu0 %v124
  %v316 = vpop.f32.mrf.mxu0
  %v317 = vadd.f32 0.0, %v316
  %v318 = vpop.f32.mrf.mxu0
  %v319 = vpop.f32.mrf.mxu0
  %v320 = vadd.f32 0.0, %v319
  %v321 = vpop.f32.mrf.mxu0
  %322 = vmatprep.mubr.bf16.mxu0 %v127
  %323 = vmatmul.mubr.bf16.gmra.mxu0 %v126
  %v324 = vpop.f32.mrf.mxu0
  %v325 = vadd.f32 0.0, %v324
  %v326 = vpop.f32.mrf.mxu0
  %v327 = vpop.f32.mrf.mxu0
  %v328 = vadd.f32 0.0, %v327
  %v329 = vpop.f32.mrf.mxu0
  %330 = vmatprep.mubr.bf16.mxu0 %v129
  %331 = vmatmul.mubr.bf16.gmra.mxu0 %v128
  %v332 = vpop.f32.mrf.mxu0
  %v333 = vadd.f32 0.0, %v332
  %v334 = vpop.f32.mrf.mxu0
  %v335 = vpop.f32.mrf.mxu0
  %v336 = vadd.f32 0.0, %v335
  %v337 = vpop.f32.mrf.mxu0
  %338 = vdwg.mxu0
  %v339 = vadd.f32 %v277, %v280
  %v340 = vadd.f32 %v339, %v285
  %v341 = vadd.f32 %v340, %v288
  %v342 = vadd.f32 %v341, %v293
  %v343 = vadd.f32 %v342, %v296
  %v344 = vadd.f32 %v343, %v301
  %v345 = vadd.f32 %v344, %v304
  %v346 = vadd.f32 %v345, %v309
  %v347 = vadd.f32 %v346, %v312
  %v348 = vadd.f32 %v347, %v317
  %v349 = vadd.f32 %v348, %v320
  %v350 = vadd.f32 %v349, %v325
  %v351 = vadd.f32 %v350, %v328
  %v352 = vadd.f32 %v351, %v333
  %v353 = vadd.f32 %v352, %v336
  %v354 = vrot.slane %v353, 4
  %v355 = vadd.f32 %v353, %v354
  %v356 = vrot.slane %v355, 2
  %v357 = vadd.f32 %v355, %v356
  %v358 = vrot.slane %v357, 1
  %v359 = vadd.f32 %v357, %v358
  %v360 = vmul.f32 %v277, %v277
  %v361 = vmul.f32 %v280, %v280
  %v362 = vmul.f32 %v285, %v285
  %v363 = vmul.f32 %v288, %v288
  %v364 = vmul.f32 %v293, %v293
  %v365 = vmul.f32 %v296, %v296
  %v366 = vmul.f32 %v301, %v301
  %v367 = vmul.f32 %v304, %v304
  %v368 = vmul.f32 %v309, %v309
  %v369 = vmul.f32 %v312, %v312
  %v370 = vmul.f32 %v317, %v317
  %v371 = vmul.f32 %v320, %v320
  %v372 = vmul.f32 %v325, %v325
  %v373 = vmul.f32 %v328, %v328
  %v374 = vmul.f32 %v333, %v333
  %v375 = vmul.f32 %v336, %v336
  %v376 = vadd.f32 %v360, %v361
  %v377 = vadd.f32 %v376, %v362
  %v378 = vadd.f32 %v377, %v363
  %v379 = vadd.f32 %v378, %v364
  %v380 = vadd.f32 %v379, %v365
  %v381 = vadd.f32 %v380, %v366
  %v382 = vadd.f32 %v381, %v367
  %v383 = vadd.f32 %v382, %v368
  %v384 = vadd.f32 %v383, %v369
  %v385 = vadd.f32 %v384, %v370
  %v386 = vadd.f32 %v385, %v371
  %v387 = vadd.f32 %v386, %v372
  %v388 = vadd.f32 %v387, %v373
  %v389 = vadd.f32 %v388, %v374
  %v390 = vadd.f32 %v389, %v375
  %v391 = vrot.slane %v390, 4
  %v392 = vadd.f32 %v390, %v391
  %v393 = vrot.slane %v392, 2
  %v394 = vadd.f32 %v392, %v393
  %v395 = vrot.slane %v394, 1
  %v396 = vadd.f32 %v394, %v395
  %v397 = vmul.f32 %v359, 0.0078125
  %v398 = vmul.f32 %v396, 0.0078125
  %v399 = vmul.f32 %v397, %v397
  %v400 = vsub.f32 %v398, %v399
  %v401 = vmax.f32 %v400, 0.0
  %v402 = vld [vmem:[%s2] sm:$0x1]
  %v403 = vadd.f32 %v401, 1e-05
  %v404 = vrsqrt.pop %v403
  %v405 = vmul.f32 %v402, %v404
  %v406 = vld [vmem:[%s3] sm:$0x1]
  %v407 = vmul.f32 %v397, %v405
  %v408 = vsub.f32 %v406, %v407
  %v410 = vlaneseq
  %v411 = vshrl.u32 %v410, 7
  %v412 = vsub.s32 0, %v411
  %v413 = vrot.slane %v405, %v412
  %v415 = vmul.f32 %v277, %v413
  %v416 = vmul.f32 %v280, %v413
  %v417 = vmul.f32 %v285, %v413
  %v418 = vmul.f32 %v288, %v413
  %v419 = vmul.f32 %v293, %v413
  %v420 = vmul.f32 %v296, %v413
  %v421 = vmul.f32 %v301, %v413
  %v422 = vmul.f32 %v304, %v413
  %v423 = vmul.f32 %v309, %v413
  %v424 = vmul.f32 %v312, %v413
  %v425 = vmul.f32 %v317, %v413
  %v426 = vmul.f32 %v320, %v413
  %v427 = vmul.f32 %v325, %v413
  %v428 = vmul.f32 %v328, %v413
  %v429 = vmul.f32 %v333, %v413
  %v430 = vmul.f32 %v336, %v413
  %v432 = vlaneseq
  %v433 = vshrl.u32 %v432, 7
  %v434 = vsub.s32 0, %v433
  %v435 = vrot.slane %v408, %v434
  %v437 = vadd.f32 %v415, %v435
  %v438 = vadd.f32 %v416, %v435
  %v439 = vadd.f32 %v417, %v435
  %v440 = vadd.f32 %v418, %v435
  %v441 = vadd.f32 %v419, %v435
  %v442 = vadd.f32 %v420, %v435
  %v443 = vadd.f32 %v421, %v435
  %v444 = vadd.f32 %v422, %v435
  %v445 = vadd.f32 %v423, %v435
  %v446 = vadd.f32 %v424, %v435
  %v447 = vadd.f32 %v425, %v435
  %v448 = vadd.f32 %v426, %v435
  %v449 = vadd.f32 %v427, %v435
  %v450 = vadd.f32 %v428, %v435
  %v451 = vadd.f32 %v429, %v435
  %v452 = vadd.f32 %v430, %v435
  %v453 = vpack.c.bf16 %v438, %v437
  %v454 = vpack.c.bf16 %v440, %v439
  %v455 = vpack.c.bf16 %v442, %v441
  %v456 = vpack.c.bf16 %v444, %v443
  %v457 = vpack.c.bf16 %v446, %v445
  %v458 = vpack.c.bf16 %v448, %v447
  %v459 = vpack.c.bf16 %v450, %v449
  %v460 = vpack.c.bf16 %v452, %v451
  %v469 = vunpack.c.l.b16 %v453
  %v470 = vunpack.c.h.b16 %v453
  %v471 = vunpack.c.l.b16 %v454
  %v472 = vunpack.c.h.b16 %v454
  %v473 = vunpack.c.l.b16 %v455
  %v474 = vunpack.c.h.b16 %v455
  %v475 = vunpack.c.l.b16 %v456
  %v476 = vunpack.c.h.b16 %v456
  %v477 = vunpack.c.l.b16 %v457
  %v478 = vunpack.c.h.b16 %v457
  %v479 = vunpack.c.l.b16 %v458
  %v480 = vunpack.c.h.b16 %v458
  %v481 = vunpack.c.l.b16 %v459
  %v482 = vunpack.c.h.b16 %v459
  %v483 = vunpack.c.l.b16 %v460
  %v484 = vunpack.c.h.b16 %v460
  %v485 = vpack.c.b16 %v469, %v469
  %v486 = vpack.c.b16 %v470, %v470
  %v487 = vpack.c.b16 %v471, %v471
  %v488 = vpack.c.b16 %v472, %v472
  %v489 = vpack.c.b16 %v473, %v473
  %v490 = vpack.c.b16 %v474, %v474
  %v491 = vpack.c.b16 %v475, %v475
  %v492 = vpack.c.b16 %v476, %v476
  %v493 = vpack.c.b16 %v477, %v477
  %v494 = vpack.c.b16 %v478, %v478
  %v495 = vpack.c.b16 %v479, %v479
  %v496 = vpack.c.b16 %v480, %v480
  %v497 = vpack.c.b16 %v481, %v481
  %v498 = vpack.c.b16 %v482, %v482
  %v499 = vpack.c.b16 %v483, %v483
  %v500 = vpack.c.b16 %v484, %v484
  %517 = vst [vmem:[%s4] sm:$0xf] %v485
  %518 = vst [vmem:[%s4 + $0x4] sm:$0xf] %v486
  %519 = vst [vmem:[%s4 + $0x8] sm:$0xf] %v487
  %520 = vst [vmem:[%s4 + $0xc] sm:$0xf] %v488
  %521 = vst [vmem:[%s4 + $0x10] sm:$0xf] %v489
  %522 = vst [vmem:[%s4 + $0x14] sm:$0xf] %v490
  %523 = vst [vmem:[%s4 + $0x18] sm:$0xf] %v491
  %524 = vst [vmem:[%s4 + $0x1c] sm:$0xf] %v492
  %525 = vst [vmem:[%s4 + $0x20] sm:$0xf] %v493
  %526 = vst [vmem:[%s4 + $0x24] sm:$0xf] %v494
  %527 = vst [vmem:[%s4 + $0x28] sm:$0xf] %v495
  %528 = vst [vmem:[%s4 + $0x2c] sm:$0xf] %v496
  %529 = vst [vmem:[%s4 + $0x30] sm:$0xf] %v497
  %530 = vst [vmem:[%s4 + $0x34] sm:$0xf] %v498
  %531 = vst [vmem:[%s4 + $0x38] sm:$0xf] %v499
  %532 = vst [vmem:[%s4 + $0x3c] sm:$0xf] %v500
  // Predicated region
  $region18: #{stem_fwd.1} parent=0 // pred_check
    _
  $region19: #{stem_fwd.1} parent=0 // pred_check_branch
    %534 = sbr.rel (0) target = $region21
  $region20: #{stem_fwd.1} parent=0 // pred_region
    _
  $region21: #{stem_fwd.1} parent=0 // pred_fallthru
    _
  // Predicated region
  $region22: #{stem_fwd.1} parent=0 // pred_check
    _
  $region23: #{stem_fwd.1} parent=0 // pred_check_branch
    %536 = sbr.rel (0) target = $region25
  $region24: #{stem_fwd.1} parent=0 // pred_region
    _
  $region25: #{stem_fwd.1} parent=0 // pred_fallthru
    _

</llo_original>
